<compile_context>
chip_gen: v7x
topology: tpu7x:2x2x1
jax: 0.10.0
libtpu: 0.0.40
codegen_flags: <defaults>
</compile_context>

<pallas_src>
import jax
import jax.numpy as jnp
from jax.experimental import pallas as pl
from jax.experimental.pallas import tpu as pltpu


def _cdiv(a, b):
    return -(-a // b)


def _round8(n):
    return _cdiv(n, 8) * 8


def _vmem_capacity_bytes():
    """Physical VMEM per TensorCore; conservative (v7x) fallback if unknown."""
    try:
        info = pltpu.get_tpu_info()
        cap = getattr(info, "vmem_capacity_bytes", None)
        if cap:
            return int(cap)
    except Exception:
        pass
    return 64 * 1024 * 1024


def _make_kernel(tile_r, hw, rows, ragged, lane_dense):
    n_chunks = hw // 128

    def kernel(pred_ref, gt_ref, w2_ref, out_ref):
        i = pl.program_id(0)
        start = pl.multiple_of(i * tile_r, tile_r)
        # w^2 is resident in VMEM; grab this tile's rows (always in bounds,
        # w2 is zero-padded to num_tiles * tile_r rows in the wrapper).
        w2 = w2_ref[pl.ds(start, tile_r), :]                     # (tile_r, 1)

        if lane_dense:
            # Accumulate 128-wide lane chunks straight off the refs: pure VPU
            # adds, no full-tile f32 temp, no per-row cross-lane reduce.
            acc = None
            for c in range(n_chunks):
                sl = slice(c * 128, (c + 1) * 128)
                dc = (pred_ref[:, sl].astype(jnp.float32)
                      - gt_ref[:, sl].astype(jnp.float32))
                sq = dc * dc
                acc = sq if acc is None else acc + sq            # (tile_r, 128)
            weighted = acc * w2                                   # (tile_r, 128)
        else:
            d = (pred_ref[...].astype(jnp.float32)
                 - gt_ref[...].astype(jnp.float32))
            weighted = jnp.sum(d * d, axis=-1, keepdims=True) * w2  # (tile_r, 1)

        if ragged:
            # Mask out-of-bounds rows of the last block with a SELECT so stale
            # NaN/Inf in the padded region cannot leak through w2 == 0.
            row_ids = start + jax.lax.broadcasted_iota(
                jnp.int32, (tile_r, 1), 0)
            weighted = jnp.where(row_ids < rows, weighted,
                                 jnp.zeros_like(weighted))

        if lane_dense:
            # Lane-dense per-tile partial: wrapper sums (num_tiles, 1, 128).
            out_ref[...] = jnp.sum(weighted, axis=0).reshape(1, 1, 128)
        else:
            out_ref[...] = jnp.broadcast_to(
                jnp.sum(weighted), (1, 1, 128)).astype(jnp.float32)

    return kernel


def joints_mse_loss(output, target, target_distance, points_vis,
                    target_weight, output_distance):
    """Pallas implementation of JointsMSELoss.forward (use_target_weight=True,
    use_point_dist=True). `output_distance` replaces compute_distance(...)."""
    del points_vis  # only consumed by the undefined compute_distance
    B, K, H, W = output.shape
    HW = H * W
    rows = B * K

    # Native dtype for the two big arrays (no wrapper upcast, no padding).
    pred = output.reshape(rows, HW)
    gt = target.reshape(rows, HW)
    pred_bytes = jnp.dtype(pred.dtype).itemsize
    gt_bytes = jnp.dtype(gt.dtype).itemsize
    dtype_bytes = max(pred_bytes, gt_bytes)

    # ---- per-generation tile sizing (byte budget is the only limiter) ----
    vmem_cap = _vmem_capacity_bytes()
    if vmem_cap >= 96 * 1024 * 1024:          # v5e / v6e: 128 MiB VMEM
        budget_bytes = 40 * 1024 * 1024
        vmem_limit = 64 * 1024 * 1024
    else:                                      # v7x: 64 MiB per TensorCore
        budget_bytes = 20 * 1024 * 1024
        vmem_limit = 40 * 1024 * 1024

    # 2 streamed inputs x 2 pipeline buffers share the budget.
    tile_cap = max(8, (budget_bytes // (4 * HW * dtype_bytes)) // 8 * 8)
    rows_8 = _round8(rows)
    tile_r = int(min(tile_cap, rows_8))
    num_tiles = _cdiv(rows, tile_r)
    # Keep the parallel grid balanced across the two TensorCores on v7x.
    if num_tiles > 1 and num_tiles % 2 == 1:
        nt_even = num_tiles + 1
        tile_r = max(8, _round8(_cdiv(rows, nt_even)))
        num_tiles = _cdiv(rows, tile_r)
    ragged = (num_tiles * tile_r != rows)
    lane_dense = (HW % 128 == 0)

    # Pre-square the tiny weight vector once; zero-pad it (only this vector)
    # so the in-kernel dynamic slice of the resident copy never goes OOB.
    w2 = jnp.square(target_weight.reshape(rows, 1).astype(jnp.float32))
    w2_rows = num_tiles * tile_r
    if w2_rows != rows:
        w2 = jnp.pad(w2, ((0, w2_rows - rows), (0, 0)))

    kernel = _make_kernel(tile_r, HW, rows, ragged, lane_dense)

    partials = pl.pallas_call(
        kernel,
        out_shape=jax.ShapeDtypeStruct((num_tiles, 1, 128), jnp.float32),
        grid_spec=pltpu.PrefetchScalarGridSpec(
            num_scalar_prefetch=0,
            grid=(num_tiles,),
            in_specs=[
                pl.BlockSpec((tile_r, HW), lambda i: (i, 0)),    # pred (streamed)
                pl.BlockSpec((tile_r, HW), lambda i: (i, 0)),    # gt   (streamed)
                pl.BlockSpec((w2_rows, 1), lambda i: (0, 0)),    # w^2  (resident)
            ],
            out_specs=pl.BlockSpec((1, 1, 128), lambda i: (i, 0, 0)),
        ),
        compiler_params=pltpu.CompilerParams(
            dimension_semantics=("parallel",),            # both TCs on v7x
            vmem_limit_bytes=vmem_limit,
        ),
        cost_estimate=pl.CostEstimate(
            flops=3 * rows * HW,
            transcendentals=0,
            bytes_accessed=(rows * HW * (pred_bytes + gt_bytes)
                            + w2_rows * 4 + num_tiles * 128 * 4),
        ),
    )(pred, gt, w2)

    if lane_dense:
        hm_sum = jnp.sum(partials)
    else:
        hm_sum = jnp.sum(partials[:, 0, 0])

    # Tiny (B, K) distance term: plain JAX in the wrapper (not worth a kernel).
    dist_mse = jnp.mean(
        (output_distance.astype(jnp.float32)
         - target_distance.astype(jnp.float32)) ** 2)

    loss = (0.5 / (B * HW) * hm_sum + 0.1 * 0.5 * dist_mse) / K
    return loss


def _reference_loss(output, target, target_distance, target_weight,
                    output_distance):
    """Pure-JAX reference mirroring the PyTorch loop exactly."""
    B, K, H, W = output.shape
    hp = output.reshape(B, K, -1).astype(jnp.float32)
    hg = target.reshape(B, K, -1).astype(jnp.float32)
    tw = target_weight.astype(jnp.float32)  # (B, K, 1)
    loss = 0.0
    for k in range(K):
        pk = hp[:, k, :] * tw[:, k]
        gk = hg[:, k, :] * tw[:, k]
        loss = loss + 0.5 * jnp.mean((pk - gk) ** 2)
    loss = loss + 0.1 * 0.5 * jnp.mean(
        (output_distance.astype(jnp.float32)
         - target_distance.astype(jnp.float32)) ** 2)
    return loss / K


if __name__ == "__main__":
    key = jax.random.PRNGKey(0)
    k1, k2, k3, k4, k5 = jax.random.split(key, 5)

    B, K, H, W = 2, 4, 16, 16
    output = jax.random.normal(k1, (B, K, H, W), dtype=jnp.float32)
    target = jax.random.normal(k2, (B, K, H, W), dtype=jnp.float32)
    target_weight = (jax.random.uniform(k3, (B, K, 1)) > 0.3).astype(jnp.float32)
    target_distance = jax.random.normal(k4, (B, K), dtype=jnp.float32)
    output_distance = jax.random.normal(k5, (B, K), dtype=jnp.float32)
    points_vis = jnp.ones((B, K), dtype=jnp.float32)

    loss = joints_mse_loss(output, target, target_distance, points_vis,
                           target_weight, output_distance)
    loss = jax.block_until_ready(loss)

    ref = _reference_loss(output, target, target_distance, target_weight,
                          output_distance)
    assert jnp.allclose(loss, ref, rtol=1e-5, atol=1e-6), (loss, ref)

    print("KERNEL_OK")
</pallas_src>

<mosaic_0001>
module attributes {stable_mosaic.version = 11 : i64} {
  func.func @kernel(%arg0: i32, %arg1: memref<8x256xf32, #tpu.memory_space<vmem>>, %arg2: memref<8x256xf32, #tpu.memory_space<vmem>>, %arg3: memref<8x1xf32, #tpu.memory_space<vmem>>, %arg4: memref<1x1x128xf32, #tpu.memory_space<vmem>>) attributes {dimension_semantics = [#tpu.dimension_semantics<parallel>], iteration_bounds = array<i64: 1>, scalar_prefetch = 0 : i64, scratch_operands = 0 : i64, tpu.core_type = #tpu.core_type<tc>, window_params = [{transform_indices = @transform_0, window_bounds = array<i64: 8, 256>}, {transform_indices = @transform_1, window_bounds = array<i64: 8, 256>}, {pipeline_mode = #tpu.pipeline_mode<synchronous>, transform_indices = @transform_2, window_bounds = array<i64: 8, 1>}, {transform_indices = @transform_3, window_bounds = array<i64: 1, 1, 128>}]} {
    %c8_i32 = arith.constant 8 : i32
    %0 = arith.muli %arg0, %c8_i32 : i32
    %1 = tpu.assume_multiple %0, 8 : i32
    %2 = arith.index_cast %1 : i32 to index
    %c0 = arith.constant 0 : index
    %3 = vector.load %arg3[%2, %c0] : memref<8x1xf32, #tpu.memory_space<vmem>>, vector<8x1xf32>
    %c0_0 = arith.constant 0 : index
    %c0_1 = arith.constant 0 : index
    %4 = vector.load %arg1[%c0_0, %c0_1] : memref<8x256xf32, #tpu.memory_space<vmem>>, vector<8x128xf32>
    %c0_2 = arith.constant 0 : index
    %c0_3 = arith.constant 0 : index
    %5 = vector.load %arg2[%c0_2, %c0_3] : memref<8x256xf32, #tpu.memory_space<vmem>>, vector<8x128xf32>
    %6 = arith.subf %4, %5 : vector<8x128xf32>
    %7 = arith.mulf %6, %6 : vector<8x128xf32>
    %c0_4 = arith.constant 0 : index
    %c128 = arith.constant 128 : index
    %8 = vector.load %arg1[%c0_4, %c128] : memref<8x256xf32, #tpu.memory_space<vmem>>, vector<8x128xf32>
    %c0_5 = arith.constant 0 : index
    %c128_6 = arith.constant 128 : index
    %9 = vector.load %arg2[%c0_5, %c128_6] : memref<8x256xf32, #tpu.memory_space<vmem>>, vector<8x128xf32>
    %10 = arith.subf %8, %9 : vector<8x128xf32>
    %11 = arith.mulf %10, %10 : vector<8x128xf32>
    %12 = arith.addf %7, %11 : vector<8x128xf32>
    %13 = vector.broadcast %3 : vector<8x1xf32> to vector<8x128xf32>
    %14 = arith.mulf %12, %13 : vector<8x128xf32>
    %cst = arith.constant dense<0.000000e+00> : vector<128xf32>
    %15 = vector.multi_reduction <add>, %14, %cst [0] : vector<8x128xf32> to vector<128xf32>
    %16 = vector.shape_cast %15 : vector<128xf32> to vector<1x1x128xf32>
    %c0_7 = arith.constant 0 : index
    %c0_8 = arith.constant 0 : index
    %c0_9 = arith.constant 0 : index
    %17 = vector.load %arg4[%c0_7, %c0_8, %c0_9] : memref<1x1x128xf32, #tpu.memory_space<vmem>>, vector<1x1x128xf32>
    tpu.vector_store %arg4[%c0_7, %c0_8, %c0_9], %16 {strides = array<i32>} : memref<1x1x128xf32, #tpu.memory_space<vmem>>, vector<1x1x128xf32>,
    return
  }
  func.func @transform_0(%arg0: i32) -> (i32, i32) {
    %c0_i32 = arith.constant 0 : i32
    %c0_i32_0 = arith.constant 0 : i32
    return %arg0, %c0_i32 : i32, i32
  }
  func.func @transform_1(%arg0: i32) -> (i32, i32) {
    %c0_i32 = arith.constant 0 : i32
    %c0_i32_0 = arith.constant 0 : i32
    return %arg0, %c0_i32 : i32, i32
  }
  func.func @transform_2(%arg0: i32) -> (i32, i32) {
    %c0_i32 = arith.constant 0 : i32
    %c0_i32_0 = arith.constant 0 : i32
    %c0_i32_1 = arith.constant 0 : i32
    return %c0_i32, %c0_i32_0 : i32, i32
  }
  func.func @transform_3(%arg0: i32) -> (i32, i32, i32) {
    %c0_i32 = arith.constant 0 : i32
    %c0_i32_0 = arith.constant 0 : i32
    %c0_i32_1 = arith.constant 0 : i32
    return %arg0, %c0_i32, %c0_i32_0 : i32, i32, i32
  }
}

</mosaic_0001>

<llo_original>
// kernel: tpu_custom_call.1
$region0: #{tpu_custom_call.1}
  #allocation0 [shape = 'u32[]', space=smem, size = 0x4, offset = 0x4, fixed_abs, tag = 'smem constant byte address 0x4 - core index']
  #allocation1 [shape = 'u32[144,128]{1,0:T(1,128)}', space=vmem, size = 0x12000, scoped, tag = 'internal scratch']
  %s0 = inlined_call_operand.hbm [shape: f32[8,256], index: 0, kind: input, shape index: {}]
  %s1 = inlined_call_operand.hbm [shape: f32[8,256], index: 1, kind: input, shape index: {}]
  %s2 = inlined_call_operand.vmem [shape: f32[8,1], index: 2, kind: input, shape index: {}]
  %s3 = inlined_call_operand.hbm [shape: f32[1,1,128], index: 3, kind: output, shape index: {}]
  %s4 = sld [smem:[#allocation0]]
  $region30: #{tpu_custom_call.1} parent=0
    _
  %s6 = ssub.s32 1, %s4
  %s7 = scalar_select 0, %s6, %s4
  $region1: #{tpu_custom_call.1} parent=0
    #allocation2 [shape = 'u8[8192]{0}', space=vmem, size = 0x2000, scoped, tag = 'input window, operand 0, single buffered']
    #allocation3 [shape = 's32[1]{0}', space=sflag, size = 0x4, scoped, tag = 'scoped memory for tpu_custom_call.1']
    #allocation4 [shape = 's32[1]{0}', space=sflag, size = 0x4, scoped, tag = 'scoped memory for tpu_custom_call.1']
    #allocation5 [shape = 'u8[8192]{0}', space=vmem, size = 0x2000, scoped, tag = 'input window, operand 1, single buffered']
    #allocation6 [shape = 's32[1]{0}', space=sflag, size = 0x4, scoped, tag = 'scoped memory for tpu_custom_call.1']
    #allocation7 [shape = 'u8[512]{0}', space=vmem, size = 0x400, scoped, tag = 'output window, operand 0, single buffered']
    %8 = vsyncpa [#allocation3], 0
    %9 = vsyncpa [#allocation6], 0
    %10 = vsyncpa [#allocation4], 0
    // Predicated region
    $region2: #{tpu_custom_call.1} parent=1 // pred_check
      _
    $region3: #{tpu_custom_call.1} parent=1 // pred_check_branch
      %12 = sbr.rel (0) target = $region5
    $region4: #{tpu_custom_call.1} parent=1 // pred_region
      %s14 = ssub.s32 256, 256
      %15 = vsyncadd [#allocation3], %s14
      %s17 = sshll.u32 [#allocation2], 4
      %s18 = int_to_ptr.vmem [resolvable:$true] %s17
      %20 = dma.hbm_to_vmem [thread:$0]  %s0, 256, %s18, [#allocation3]
    $region5: #{tpu_custom_call.1} parent=1 // pred_fallthru
      _
    // Predicated region
    $region6: #{tpu_custom_call.1} parent=1 // pred_check
      _
    $region7: #{tpu_custom_call.1} parent=1 // pred_check_branch
      %22 = sbr.rel (0) target = $region9
    $region8: #{tpu_custom_call.1} parent=1 // pred_region
      %s24 = ssub.s32 256, 256
      %25 = vsyncadd [#allocation6], %s24
      %s27 = sshll.u32 [#allocation5], 4
      %s28 = int_to_ptr.vmem [resolvable:$true] %s27
      %30 = dma.hbm_to_vmem [thread:$0]  %s1, 256, %s28, [#allocation6]
    $region9: #{tpu_custom_call.1} parent=1 // pred_fallthru
      _
    // Predicated region
    $region10: #{tpu_custom_call.1} parent=1 // pred_check
      _
    $region11: #{tpu_custom_call.1} parent=1 // pred_check_branch
      %32 = sbr.rel (0) target = $region13
    $region12: #{tpu_custom_call.1} parent=1 // pred_region
      _
    $region13: #{tpu_custom_call.1} parent=1 // pred_fallthru
      _
    // Predicated region
    $region14: #{tpu_custom_call.1} parent=1 // pred_check
      _
    $region15: #{tpu_custom_call.1} parent=1 // pred_check_branch
      %34 = sbr.rel (0) target = $region17
    $region16: #{tpu_custom_call.1} parent=1 // pred_region
      %35 = dma.done [#allocation3], 256
    $region17: #{tpu_custom_call.1} parent=1 // pred_fallthru
      _
    // Predicated region
    $region18: #{tpu_custom_call.1} parent=1 // pred_check
      _
    $region19: #{tpu_custom_call.1} parent=1 // pred_check_branch
      %37 = sbr.rel (0) target = $region21
    $region20: #{tpu_custom_call.1} parent=1 // pred_region
      %38 = dma.done [#allocation6], 256
    $region21: #{tpu_custom_call.1} parent=1 // pred_fallthru
      _
    %s39 = smul.u32 0, 8
    %s40 = scalar_lea.vmem %s2, %s39
    %v41 = vld [vmem:[%s40] sm:$0xff]
    %v42 = vld [vmem:[#allocation2] sm:$0xff]
    %v43 = vld [vmem:[#allocation5] sm:$0xff]
    %v44 = vsub.f32 %v42, %v43
    %v45 = vmul.f32 %v44, %v44
    %v46 = vld [vmem:[#allocation2 + $0x8] sm:$0xff]
    %v47 = vld [vmem:[#allocation5 + $0x8] sm:$0xff]
    %v48 = vsub.f32 %v46, %v47
    %v49 = vmul.f32 %v48, %v48
    %v50 = vadd.f32 %v45, %v49
    %52 = vset.pattern.permute.xlu0 0
    %53 = vperm.xlu0 %52, %v41
    %v54 = vpop.permute.xlu0 %53
    %v56 = vmul.f32 %v50, %v54
    %v57 = vrot.slane %v56, 4
    %v58 = vadd.f32 %v56, %v57
    %v59 = vrot.slane %v58, 2
    %v60 = vadd.f32 %v58, %v59
    %v61 = vrot.slane %v60, 1
    %v62 = vadd.f32 %v60, %v61
    %63 = vst [vmem:[#allocation7] sm:$0x1] %v62
    // Predicated region
    $region22: #{tpu_custom_call.1} parent=1 // pred_check
      _
    $region23: #{tpu_custom_call.1} parent=1 // pred_check_branch
      %65 = sbr.rel (0) target = $region25
    $region24: #{tpu_custom_call.1} parent=1 // pred_region
      %s67 = ssub.s32 16, 16
      %68 = vsyncadd [#allocation4], %s67
      %s70 = sshll.u32 [#allocation7], 4
      %s71 = int_to_ptr.vmem [resolvable:$true] %s70
      %73 = dma.vmem_to_hbm [thread:$0]  %s71, 16, %s3, [#allocation4]
    $region25: #{tpu_custom_call.1} parent=1 // pred_fallthru
      _
    // Predicated region
    $region26: #{tpu_custom_call.1} parent=1 // pred_check
      _
    $region27: #{tpu_custom_call.1} parent=1 // pred_check_branch
      %75 = sbr.rel (0) target = $region29
    $region28: #{tpu_custom_call.1} parent=1 // pred_region
      %76 = dma.done [#allocation4], 16
    $region29: #{tpu_custom_call.1} parent=1 // pred_fallthru
      _
    %77 = vsyncpa [#allocation3], 1
    %78 = vsyncpa [#allocation6], 1
    %79 = vsyncpa [#allocation4], 1

</llo_original>
